<compile_context>
chip_gen: v6e
topology: v6e:2x2x1
jax: 0.10.0
libtpu: 0.0.40
codegen_flags: <defaults>
</compile_context>

<pallas_src>
import jax
import jax.numpy as jnp
from jax.experimental import pallas as pl
from jax.experimental.pallas import tpu as pltpu


# ----------------------------- Pallas kernel -------------------------------
def _soft_lighting_kernel(scale_ref, vis_ref, spec_ref, out_ref):
    # scale_ref: SMEM (1,)        f32  sigmoid(alpha), precomputed in wrapper
    # vis_ref:   VMEM (1, 8, T)   f32  visibility {0.0, 1.0}, sublane/lane-dense
    # spec_ref:  VMEM (C, 8, T)   f32  spectrum, channels-major, dense
    scale = scale_ref[0]
    spec = spec_ref[...]
    vis = jnp.broadcast_to(vis_ref[...], spec.shape)      # leading-dim broadcast
    shaded = (spec * scale).astype(spec.dtype)
    # Bit-exact vs torch.where: visible points pass `spec` through unchanged.
    out_ref[...] = jnp.where(vis != 0.0, spec, shaded)


def soft_lighting_pallas(alpha, visible, spectrum_cm, *,
                         max_points_per_tile=131072, min_tiles=None):
    """out[c, n] = spectrum_cm[c, n] if visible[n] else spectrum_cm[c, n]*sigmoid(alpha).

    spectrum_cm: [C, N] channels-major f32; visible: [N] bool/num; alpha: scalar.
    """
    C, N = spectrum_cm.shape
    dtype = spectrum_cm.dtype

    # Hoist sigmoid(alpha): one scalar op per call, lives in SMEM.
    scale = jax.nn.sigmoid(jnp.asarray(alpha, jnp.float32)).reshape(1)

    # Visibility as an f32 row (fuses into the isect producer under jit).
    vis = visible.astype(jnp.float32).reshape(1, N)

    # ---- sublane-dense presentation: split N -> (8, L); free row-major reshape
    if N % 8 != 0:
        # Rare glue path (real producers emit N % 8 == 0): pad by < 8 points.
        n8 = pl.cdiv(N, 8) * 8
        spectrum_cm = jnp.pad(spectrum_cm, ((0, 0), (0, n8 - N)))
        vis = jnp.pad(vis, ((0, 0), (0, n8 - N)))
    else:
        n8 = N
    L = n8 // 8
    spec3 = spectrum_cm.reshape(C, 8, L)
    vis3 = vis.reshape(1, 8, L)

    # ---- tiling: balanced lane tiles (multiples of 128); no padding of L ----
    if min_tiles is None:
        # Give v7x's two TensorCores >= 2 "parallel" steps to share HBM BW;
        # on single-TC v5e/v6e the extra step is ~0.35 us — noise at this size.
        min_tiles = 2 if N >= 16384 else 1
    num_tiles = max(pl.cdiv(N, max_points_per_tile), min_tiles)
    tile_lane = pl.cdiv(pl.cdiv(L, num_tiles), 128) * 128   # 1024-point quantum
    grid = (pl.cdiv(L, tile_lane),)   # trailing block may be ragged: OOB writes
                                      # are discarded, OOB reads never kept.

    out3 = pl.pallas_call(
        _soft_lighting_kernel,
        out_shape=jax.ShapeDtypeStruct((C, 8, L), dtype),
        grid=grid,
        in_specs=[
            pl.BlockSpec(memory_space=pltpu.MemorySpace.SMEM),      # sigmoid(alpha)
            pl.BlockSpec((1, 8, tile_lane), lambda i: (0, 0, i)),   # visibility
            pl.BlockSpec((C, 8, tile_lane), lambda i: (0, 0, i)),   # spectrum
        ],
        out_specs=pl.BlockSpec((C, 8, tile_lane), lambda i: (0, 0, i)),
        compiler_params=pltpu.CompilerParams(
            dimension_semantics=("parallel",)),
        cost_estimate=pl.CostEstimate(
            flops=2 * C * N,
            bytes_accessed=(2 * C + 1) * N * 4,
            transcendentals=0),
    )(scale, vis3, spec3)

    out_cm = out3.reshape(C, n8)
    return out_cm if n8 == N else out_cm[:, :N]


# ------------------------------ module port --------------------------------
def learned_constant_soft_lighting_forward(pts, lights, isect_fn, alpha,
                                           latent=None, mask=None):
    """Port of LearnedConstantSoftLighting.forward (mask=None path).

    Spectrum is carried channels-major [C, N] end-to-end (producer -> kernel ->
    return); `spectrum.T` recovers the torch module's [N, C] layout.
    """
    pts = pts if mask is None else pts[mask]
    d, dist, spectrum_cm = lights(pts, mask=mask)            # spectrum: [C, N]
    # Reference: far = dist.max().item() if mask and mask.any() else 6
    # TODO(synk): the masked path needs a host .item() sync on dist.max();
    # only the mask=None path (far = 6) is exercised here.
    far = 6.0
    visible, _, _ = isect_fn(r_o=pts, r_d=d, near=0.1, far=far, eps=0.001)
    spectrum_cm = soft_lighting_pallas(alpha, visible, spectrum_cm)
    return d, spectrum_cm


# --------------------------------- main -------------------------------------
if __name__ == "__main__":
    # Deterministic stand-in for the `lights` callable: single point light.
    light_pos = jnp.array([2.0, 3.0, 4.0], dtype=jnp.float32)
    light_color = jnp.array([1.0, 0.8, 0.6], dtype=jnp.float32)

    def lights(p, mask=None):
        delta = light_pos[None, :] - p                        # [N, 3]
        dist = jnp.sqrt(jnp.sum(delta * delta, axis=-1))      # [N]
        direction = delta / dist[:, None]                     # [N, 3]
        # Producer emits the spectrum channels-major (lane-dense for the kernel).
        spectrum_cm = jnp.broadcast_to(light_color[:, None], (3, p.shape[0]))
        return direction, dist, spectrum_cm

    # Deterministic stand-in for `isect_fn`: occluding unit sphere at origin.
    def isect_fn(r_o, r_d, near, far, eps):
        b = jnp.sum(r_o * r_d, axis=-1)
        c = jnp.sum(r_o * r_o, axis=-1) - 1.0
        disc = b * b - c
        t = -b - jnp.sqrt(jnp.maximum(disc, 0.0))
        hit = (disc > eps) & (t > near) & (t < far)
        return ~hit, None, None

    forward = jax.jit(learned_constant_soft_lighting_forward,
                      static_argnums=(1, 2))

    # Parameter init exactly as in __init__: alpha = torch.tensor(0.0)
    alpha = jnp.float32(0.0)
    key = jax.random.PRNGKey(0)

    def check(N, k):
        pts = jax.random.normal(k, (N, 3), dtype=jnp.float32)
        d_out, spec_cm = forward(pts, lights, isect_fn, alpha)
        spec_cm = jax.block_until_ready(spec_cm)

        # Pure-JAX reference of the forward math (channels-major).
        d_ref, _, spec_cm_ref = lights(pts)
        vis_ref, _, _ = isect_fn(r_o=pts, r_d=d_ref, near=0.1, far=6.0, eps=0.001)
        sig = jax.nn.sigmoid(alpha)
        expected = jnp.where(vis_ref[None, :], spec_cm_ref, spec_cm_ref * sig)
        assert d_out.shape == (N, 3), d_out.shape
        assert spec_cm.shape == (3, N), spec_cm.shape
        assert jnp.allclose(spec_cm, expected, atol=1e-6), f"mismatch at N={N}"

    # N = 1000: multiple of 8 but NOT of 1024 -> exercises the ragged trailing
    # lane block (125 lanes against a 128-lane block, OOB writes discarded).
    check(1000, key)
    # N = 523: not a multiple of 8 -> exercises the small glue pad path.
    check(523, jax.random.fold_in(key, 1))

    print("KERNEL_OK")
</pallas_src>

<mosaic_0001>
module attributes {stable_mosaic.version = 11 : i64} {
  func.func @_soft_lighting_kernel(%arg0: i32, %arg1: memref<1xf32, #tpu.memory_space<smem>>, %arg2: memref<1x8x128xf32, #tpu.memory_space<vmem>>, %arg3: memref<3x8x128xf32, #tpu.memory_space<vmem>>, %arg4: memref<3x8x128xf32, #tpu.memory_space<vmem>>) attributes {dimension_semantics = [#tpu.dimension_semantics<parallel>], iteration_bounds = array<i64: 1>, scalar_prefetch = 0 : i64, scratch_operands = 0 : i64, tpu.core_type = #tpu.core_type<tc>, window_params = [{transform_indices = @transform_0, window_bounds = array<i64: 1>}, {transform_indices = @transform_1, window_bounds = array<i64: 1, 8, 128>}, {transform_indices = @transform_2, window_bounds = array<i64: 3, 8, 128>}, {transform_indices = @transform_3, window_bounds = array<i64: 3, 8, 128>}]} {
    %c0 = arith.constant 0 : index
    %0 = memref.load %arg1[%c0] : memref<1xf32, #tpu.memory_space<smem>>
    %c0_0 = arith.constant 0 : index
    %c0_1 = arith.constant 0 : index
    %c0_2 = arith.constant 0 : index
    %1 = vector.load %arg3[%c0_0, %c0_1, %c0_2] : memref<3x8x128xf32, #tpu.memory_space<vmem>>, vector<3x8x128xf32>
    %c0_3 = arith.constant 0 : index
    %c0_4 = arith.constant 0 : index
    %c0_5 = arith.constant 0 : index
    %2 = vector.load %arg2[%c0_3, %c0_4, %c0_5] : memref<1x8x128xf32, #tpu.memory_space<vmem>>, vector<1x8x128xf32>
    %3 = vector.shape_cast %2 : vector<1x8x128xf32> to vector<1x8x128xf32>
    %4 = vector.broadcast %3 : vector<1x8x128xf32> to vector<3x8x128xf32>
    %5 = vector.broadcast %0 : f32 to vector<3x8x128xf32>
    %6 = arith.mulf %1, %5 : vector<3x8x128xf32>
    %cst = arith.constant 0.000000e+00 : f32
    %7 = vector.broadcast %cst : f32 to vector<3x8x128xf32>
    %8 = arith.cmpf one, %4, %7 : vector<3x8x128xf32>
    %9 = arith.select %8, %1, %6 : vector<3x8x128xi1>, vector<3x8x128xf32>
    %c0_6 = arith.constant 0 : index
    %c0_7 = arith.constant 0 : index
    %c0_8 = arith.constant 0 : index
    %10 = vector.load %arg4[%c0_6, %c0_7, %c0_8] : memref<3x8x128xf32, #tpu.memory_space<vmem>>, vector<3x8x128xf32>
    tpu.vector_store %arg4[%c0_6, %c0_7, %c0_8], %9 {strides = array<i32>} : memref<3x8x128xf32, #tpu.memory_space<vmem>>, vector<3x8x128xf32>,
    return
  }
  func.func @transform_0(%arg0: i32) -> i32 {
    %c0_i32 = arith.constant 0 : i32
    %c0_i32_0 = arith.constant 0 : i32
    return %c0_i32 : i32
  }
  func.func @transform_1(%arg0: i32) -> (i32, i32, i32) {
    %c0_i32 = arith.constant 0 : i32
    %c0_i32_0 = arith.constant 0 : i32
    %c0_i32_1 = arith.constant 0 : i32
    return %c0_i32, %c0_i32_0, %arg0 : i32, i32, i32
  }
  func.func @transform_2(%arg0: i32) -> (i32, i32, i32) {
    %c0_i32 = arith.constant 0 : i32
    %c0_i32_0 = arith.constant 0 : i32
    %c0_i32_1 = arith.constant 0 : i32
    return %c0_i32, %c0_i32_0, %arg0 : i32, i32, i32
  }
  func.func @transform_3(%arg0: i32) -> (i32, i32, i32) {
    %c0_i32 = arith.constant 0 : i32
    %c0_i32_0 = arith.constant 0 : i32
    %c0_i32_1 = arith.constant 0 : i32
    return %c0_i32, %c0_i32_0, %arg0 : i32, i32, i32
  }
}

</mosaic_0001>

<llo_original>
// kernel: learned_constant_soft_lighting_forward.1
$region0: #{learned_constant_soft_lighting_forward.1}
  #allocation0 [shape = 'u32[]', space=smem, size = 0x4, offset = 0x4, fixed_abs, tag = 'smem constant byte address 0x4 - core index']
  #allocation1 [shape = 'u32[144,128]{1,0:T(1,128)}', space=vmem, size = 0x12000, scoped, tag = 'internal scratch']
  #allocation2 [shape = 'f32[1]{0:T(128)S(6)}', space=smem, size = 0x200, scoped, tag = 'scoped memory for learned_constant_soft_lighting_forward.1']
  %s0 = inlined_call_operand.<no memory space> [shape: f32[1], index: 0, kind: input, shape index: {}]
  %s1 = inlined_call_operand.vmem [shape: f32[1,8,125], index: 1, kind: input, shape index: {}]
  %s2 = inlined_call_operand.vmem [shape: f32[3,8,125], index: 2, kind: input, shape index: {}]
  %s3 = inlined_call_operand.vmem [shape: f32[3,8,125], index: 3, kind: output, shape index: {}]
  %s4 = sld [smem:[#allocation0]]
  $region22: #{learned_constant_soft_lighting_forward.1} parent=0
    _
  %s6 = ssub.s32 1, %s4
  %s7 = scalar_select 0, %s6, %s4
  %8 = sst [smem:[#allocation2]] %s0
  // Predicated region
  $region2: #{learned_constant_soft_lighting_forward.1} parent=0 // pred_check
    _
  $region3: #{learned_constant_soft_lighting_forward.1} parent=0 // pred_check_branch
    %10 = sbr.rel (0) target = $region5
  $region4: #{learned_constant_soft_lighting_forward.1} parent=0 // pred_region
    _
  $region5: #{learned_constant_soft_lighting_forward.1} parent=0 // pred_fallthru
    _
  // Predicated region
  $region6: #{learned_constant_soft_lighting_forward.1} parent=0 // pred_check
    _
  $region7: #{learned_constant_soft_lighting_forward.1} parent=0 // pred_check_branch
    %12 = sbr.rel (0) target = $region9
  $region8: #{learned_constant_soft_lighting_forward.1} parent=0 // pred_region
    _
  $region9: #{learned_constant_soft_lighting_forward.1} parent=0 // pred_fallthru
    _
  // Predicated region
  $region10: #{learned_constant_soft_lighting_forward.1} parent=0 // pred_check
    _
  $region11: #{learned_constant_soft_lighting_forward.1} parent=0 // pred_check_branch
    %14 = sbr.rel (0) target = $region13
  $region12: #{learned_constant_soft_lighting_forward.1} parent=0 // pred_region
    _
  $region13: #{learned_constant_soft_lighting_forward.1} parent=0 // pred_fallthru
    _
  %s15 = sld [smem:[#allocation2]]
  %v16 = vld [vmem:[%s2] sm:$0xff]
  %v17 = vld [vmem:[%s2 + $0x8] sm:$0xff]
  %v18 = vld [vmem:[%s2 + $0x10] sm:$0xff]
  %v19 = vld [vmem:[%s1] sm:$0xff]
  %v20 = vstv %s15
  %v21 = vmul.f32 %v16, %v20
  %v22 = vmul.f32 %v17, %v20
  %v23 = vmul.f32 %v18, %v20
  %vm24 = vcmp.ne.f32.partialorder %v19, 0.0
  %v25 = vsel %vm24, %v16, %v21
  %v26 = vsel %vm24, %v17, %v22
  %v27 = vsel %vm24, %v18, %v23
  %28 = vst [vmem:[%s3] sm:$0xff] %v25
  %29 = vst [vmem:[%s3 + $0x8] sm:$0xff] %v26
  %30 = vst [vmem:[%s3 + $0x10] sm:$0xff] %v27
  // Predicated region
  $region14: #{learned_constant_soft_lighting_forward.1} parent=0 // pred_check
    _
  $region15: #{learned_constant_soft_lighting_forward.1} parent=0 // pred_check_branch
    %32 = sbr.rel (0) target = $region17
  $region16: #{learned_constant_soft_lighting_forward.1} parent=0 // pred_region
    _
  $region17: #{learned_constant_soft_lighting_forward.1} parent=0 // pred_fallthru
    _
  // Predicated region
  $region18: #{learned_constant_soft_lighting_forward.1} parent=0 // pred_check
    _
  $region19: #{learned_constant_soft_lighting_forward.1} parent=0 // pred_check_branch
    %34 = sbr.rel (0) target = $region21
  $region20: #{learned_constant_soft_lighting_forward.1} parent=0 // pred_region
    _
  $region21: #{learned_constant_soft_lighting_forward.1} parent=0 // pred_fallthru
    _

</llo_original>
